<compile_context>
chip_gen: v5e
topology: v5e:2x2
jax: 0.10.0
libtpu: 0.0.40
codegen_flags: <defaults>
</compile_context>

<pallas_src>
import math

import jax
import jax.numpy as jnp
from jax import lax
from jax.experimental import pallas as pl
from jax.experimental.pallas import tpu as pltpu


def _round_up(x, m):
    return (x + m - 1) // m * m


def _cdiv(a, b):
    return -(-a // b)


def _vmem_limit_bytes():
    """Explicit scoped-VMEM limit: ~75% of physical, capped at 100 MiB."""
    cap = 128 * 1024 * 1024
    try:
        cap = int(pltpu.get_tpu_info().vmem_capacity_bytes)
    except Exception:
        pass
    return int(min(cap * 3 // 4, 100 * 1024 * 1024))


def _image_mlp_kernel(x_ref, w1_ref, b1_ref, w2_ref, b2_ref, o_ref, acc_ref):
    k = pl.program_id(1)

    @pl.when(k == 0)
    def _init():
        acc_ref[...] = jnp.zeros_like(acc_ref)

    # fc1 chunk: (tb, input_dim) @ (input_dim, tk) -> (tb, tk); f32 accumulation.
    feat = jnp.dot(x_ref[...], w1_ref[...], preferred_element_type=jnp.float32)
    feat = jnp.maximum(feat + b1_ref[...], 0.0)

    # TODO(synk): Dropout(0.3) is identity at inference (eval mode); omitted.

    # tohash contribution of this hidden chunk: (tb, tk) @ (tk, out_pad).
    acc_ref[...] += jnp.dot(feat.astype(w2_ref.dtype), w2_ref[...],
                            preferred_element_type=jnp.float32)

    @pl.when(k == pl.num_programs(1) - 1)
    def _finalize():
        out = jnp.tanh(acc_ref[...] + b2_ref[...])
        # F.normalize(out, p=2, dim=1): divide by max(||row||, 1e-12)
        #   == multiply by rsqrt(max(sum(row^2), 1e-24)).
        ss = jnp.sum(out * out, axis=-1, keepdims=True)
        inv = lax.rsqrt(jnp.maximum(ss, 1e-24))
        o_ref[...] = (out * inv).astype(o_ref.dtype)


def prepare_image_mlp_params(w1, b1, w2, b2):
    """One-time (model-load) weight preparation: bf16 cast + lane padding.

    w1: (input_dim, 4096) f32   (transposed PyTorch fc1.weight)
    b1: (4096,) f32
    w2: (4096, hash_lens) f32   (transposed PyTorch tohash.weight)
    b2: (hash_lens,) f32
    """
    hidden = w1.shape[1]
    hash_lens = w2.shape[1]
    out_pad = _round_up(hash_lens, 128)

    w1_b = w1.astype(jnp.bfloat16)
    w2_p = jnp.pad(w2.astype(jnp.bfloat16), ((0, 0), (0, out_pad - hash_lens)))
    b1_2d = b1.reshape(1, hidden).astype(jnp.float32)
    b2_p = jnp.pad(b2.reshape(1, hash_lens).astype(jnp.float32),
                   ((0, 0), (0, out_pad - hash_lens)))
    return {"w1": w1_b, "b1": b1_2d, "w2": w2_p, "b2": b2_p,
            "hash_lens": hash_lens}


def image_mlp_forward(x, params, *, block_b=256, block_k=512):
    """Pallas implementation of ImageMlp.forward (inference).

    x      : (B, input_dim) float32
    params : output of prepare_image_mlp_params
    returns (B, hash_lens) float32, L2-normalized along dim 1.
    """
    w1, b1, w2, b2 = params["w1"], params["b1"], params["w2"], params["b2"]
    hash_lens = params["hash_lens"]

    B, input_dim = x.shape
    hidden = w1.shape[1]
    out_pad = w2.shape[1]

    # Balanced batch tile: multiple of 16 (bf16 sublane packing), chosen so the
    # last tile is not mostly padding.  block_b=256 keeps the working set well
    # inside v7x's 64 MiB/TC VMEM and is safe on v5e/v6e.
    n_tiles = max(1, _cdiv(B, block_b))
    tb = _round_up(_cdiv(B, n_tiles), 16)
    Bp = _round_up(B, tb)

    # Hidden-dim reduction chunk (hidden = 4096 is fixed by fc1).
    tk = block_k if hidden % block_k == 0 else hidden

    # Tail-only padding of x (no full-array rewrite), cast to bf16 for the MXU.
    x_b = x.astype(jnp.bfloat16)
    if Bp != B:
        x_b = jnp.pad(x_b, ((0, Bp - B), (0, 0)))

    grid = (Bp // tb, hidden // tk)

    cost = pl.CostEstimate(
        flops=2 * Bp * (input_dim * hidden + hidden * out_pad),
        transcendentals=Bp * out_pad,  # tanh (+ negligible rsqrt)
        bytes_accessed=(x_b.size * 2
                        + grid[0] * (w1.size * 2 + w2.size * 2)
                        + b1.size * 4 + b2.size * 4
                        + Bp * out_pad * 4),
    )

    out = pl.pallas_call(
        _image_mlp_kernel,
        out_shape=jax.ShapeDtypeStruct((Bp, out_pad), jnp.float32),
        grid_spec=pltpu.PrefetchScalarGridSpec(
            num_scalar_prefetch=0,
            grid=grid,
            in_specs=[
                pl.BlockSpec((tb, input_dim), lambda i, k: (i, 0)),   # x tile (re-used over k)
                pl.BlockSpec((input_dim, tk), lambda i, k: (0, k)),   # w1 column chunk (streamed)
                pl.BlockSpec((1, tk), lambda i, k: (0, k)),           # b1 chunk
                pl.BlockSpec((tk, out_pad), lambda i, k: (k, 0)),     # w2 row chunk (streamed)
                pl.BlockSpec((1, out_pad), lambda i, k: (0, 0)),      # b2 (tiny, constant)
            ],
            out_specs=pl.BlockSpec((tb, out_pad), lambda i, k: (i, 0)),
            scratch_shapes=[pltpu.VMEM((tb, out_pad), jnp.float32)],
        ),
        compiler_params=pltpu.CompilerParams(
            # batch tiles are independent -> megacore; hidden axis is a reduction.
            dimension_semantics=("parallel", "arbitrary"),
            vmem_limit_bytes=_vmem_limit_bytes(),
        ),
        cost_estimate=cost,
    )(x_b, w1, b1, w2, b2)

    return out[:B, :hash_lens]


def _reference(x, w1, b1, w2, b2):
    """Pure-JAX reference using the same bf16 matmul operands as the kernel."""
    feat = jnp.dot(x.astype(jnp.bfloat16), w1.astype(jnp.bfloat16),
                   preferred_element_type=jnp.float32) + b1
    feat = jnp.maximum(feat, 0.0)
    hid = jnp.dot(feat.astype(jnp.bfloat16), w2.astype(jnp.bfloat16),
                  preferred_element_type=jnp.float32) + b2
    out = jnp.tanh(hid)
    norm = jnp.sqrt(jnp.sum(out * out, axis=1, keepdims=True))
    return out / jnp.maximum(norm, 1e-12)


def init_params(key, input_dim, hidden, hash_lens):
    """Shapes/init matching ImageMlp (fc1 default Linear init; tohash.weight ~ N(0,1))."""
    k1, kb1, k2, kb2 = jax.random.split(key, 4)
    bound1 = 1.0 / math.sqrt(input_dim)
    w1 = jax.random.uniform(k1, (input_dim, hidden), jnp.float32, -bound1, bound1)
    b1 = jax.random.uniform(kb1, (hidden,), jnp.float32, -bound1, bound1)
    w2 = jax.random.normal(k2, (hidden, hash_lens), jnp.float32)  # std=1 init
    bound2 = 1.0 / math.sqrt(hidden)
    b2 = jax.random.uniform(kb2, (hash_lens,), jnp.float32, -bound2, bound2)
    return w1, b1, w2, b2


if __name__ == "__main__":
    # Small demo shapes consistent with the module (hidden=4096 is fixed by fc1).
    B = 16
    input_dim = 128
    hidden = 4096
    hash_lens = 64

    key = jax.random.PRNGKey(0)
    kx, kp = jax.random.split(key)
    x = jax.random.normal(kx, (B, input_dim), dtype=jnp.float32)
    w1, b1, w2, b2 = init_params(kp, input_dim, hidden, hash_lens)

    params = prepare_image_mlp_params(w1, b1, w2, b2)  # one-time model-load prep
    out = image_mlp_forward(x, params)
    jax.block_until_ready(out)

    ref = _reference(x, w1, b1, w2, b2)
    assert out.shape == (B, hash_lens)
    assert jnp.allclose(out, ref, atol=1e-2, rtol=1e-2), "mismatch vs reference"
    # Output rows should be (approximately) unit L2 norm.
    norms = jnp.linalg.norm(out, axis=1)
    assert jnp.allclose(norms, 1.0, atol=1e-3), "rows not L2-normalized"

    print("KERNEL_OK")
</pallas_src>

<mosaic_0001>
module attributes {stable_mosaic.version = 11 : i64} {
  func.func @_image_mlp_kernel(%arg0: i32, %arg1: i32, %arg2: memref<16x128xbf16, #tpu.memory_space<vmem>>, %arg3: memref<128x512xbf16, #tpu.memory_space<vmem>>, %arg4: memref<1x512xf32, #tpu.memory_space<vmem>>, %arg5: memref<512x128xbf16, #tpu.memory_space<vmem>>, %arg6: memref<1x128xf32, #tpu.memory_space<vmem>>, %arg7: memref<16x128xf32, #tpu.memory_space<vmem>>, %arg8: memref<16x128xf32, #tpu.memory_space<vmem>>) attributes {dimension_semantics = [#tpu.dimension_semantics<parallel>, #tpu.dimension_semantics<arbitrary>], iteration_bounds = array<i64: 1, 8>, scalar_prefetch = 0 : i64, scratch_operands = 1 : i64, tpu.core_type = #tpu.core_type<tc>, window_params = [{transform_indices = @transform_0, window_bounds = array<i64: 16, 128>}, {transform_indices = @transform_1, window_bounds = array<i64: 128, 512>}, {transform_indices = @transform_2, window_bounds = array<i64: 1, 512>}, {transform_indices = @transform_3, window_bounds = array<i64: 512, 128>}, {pipeline_mode = #tpu.pipeline_mode<synchronous>, transform_indices = @transform_4, window_bounds = array<i64: 1, 128>}, {transform_indices = @transform_5, window_bounds = array<i64: 16, 128>}]} {
    %c0_i32 = arith.constant 0 : i32
    %0 = arith.cmpi eq, %arg1, %c0_i32 : i32
    %1 = arith.extui %0 : i1 to i32
    %c0_i32_0 = arith.constant 0 : i32
    %2 = arith.cmpi ne, %1, %c0_i32_0 : i32
    scf.if %2 {
      %cst_15 = arith.constant 0.000000e+00 : f32
      %20 = vector.broadcast %cst_15 : f32 to vector<16x128xf32>
      %c0_16 = arith.constant 0 : index
      %c0_17 = arith.constant 0 : index
      %21 = vector.load %arg8[%c0_16, %c0_17] : memref<16x128xf32, #tpu.memory_space<vmem>>, vector<16x128xf32>
      tpu.vector_store %arg8[%c0_16, %c0_17], %20 {strides = array<i32>} : memref<16x128xf32, #tpu.memory_space<vmem>>, vector<16x128xf32>,
    } else {
    }
    %c0 = arith.constant 0 : index
    %c0_1 = arith.constant 0 : index
    %3 = vector.load %arg2[%c0, %c0_1] : memref<16x128xbf16, #tpu.memory_space<vmem>>, vector<16x128xbf16>
    %c0_2 = arith.constant 0 : index
    %c0_3 = arith.constant 0 : index
    %4 = vector.load %arg3[%c0_2, %c0_3] : memref<128x512xbf16, #tpu.memory_space<vmem>>, vector<128x512xbf16>
    %cst = arith.constant dense<0.000000e+00> : vector<16x512xf32>
    %5 = tpu.matmul %3, %4, %cst {dimension_numbers = #tpu.dot_dimension_numbers<[1], [0], [0], [1], [0, 0, 1, 1], [], []>} : vector<16x128xbf16>, vector<128x512xbf16>, vector<16x512xf32> -> vector<16x512xf32>
    %c0_4 = arith.constant 0 : index
    %c0_5 = arith.constant 0 : index
    %6 = vector.load %arg4[%c0_4, %c0_5] : memref<1x512xf32, #tpu.memory_space<vmem>>, vector<1x512xf32>
    %7 = vector.broadcast %6 : vector<1x512xf32> to vector<16x512xf32>
    %8 = arith.addf %5, %7 : vector<16x512xf32>
    %cst_6 = arith.constant 0.000000e+00 : f32
    %9 = vector.broadcast %cst_6 : f32 to vector<16x512xf32>
    %10 = arith.maximumf %8, %9 : vector<16x512xf32>
    %c0_7 = arith.constant 0 : index
    %c0_8 = arith.constant 0 : index
    %11 = vector.load %arg8[%c0_7, %c0_8] : memref<16x128xf32, #tpu.memory_space<vmem>>, vector<16x128xf32>
    %12 = arith.truncf %10 : vector<16x512xf32> to vector<16x512xbf16>
    %c0_9 = arith.constant 0 : index
    %c0_10 = arith.constant 0 : index
    %13 = vector.load %arg5[%c0_9, %c0_10] : memref<512x128xbf16, #tpu.memory_space<vmem>>, vector<512x128xbf16>
    %cst_11 = arith.constant dense<0.000000e+00> : vector<16x128xf32>
    %14 = tpu.matmul %12, %13, %cst_11 {dimension_numbers = #tpu.dot_dimension_numbers<[1], [0], [0], [1], [0, 0, 1, 1], [], []>} : vector<16x512xbf16>, vector<512x128xbf16>, vector<16x128xf32> -> vector<16x128xf32>
    %15 = arith.addf %11, %14 : vector<16x128xf32>
    %c0_12 = arith.constant 0 : index
    %c0_13 = arith.constant 0 : index
    %16 = vector.load %arg8[%c0_12, %c0_13] : memref<16x128xf32, #tpu.memory_space<vmem>>, vector<16x128xf32>
    tpu.vector_store %arg8[%c0_12, %c0_13], %15 {strides = array<i32>} : memref<16x128xf32, #tpu.memory_space<vmem>>, vector<16x128xf32>,
    %c7_i32 = arith.constant 7 : i32
    %17 = arith.cmpi eq, %arg1, %c7_i32 : i32
    %18 = arith.extui %17 : i1 to i32
    %c0_i32_14 = arith.constant 0 : i32
    %19 = arith.cmpi ne, %18, %c0_i32_14 : i32
    scf.if %19 {
      %c0_15 = arith.constant 0 : index
      %c0_16 = arith.constant 0 : index
      %20 = vector.load %arg8[%c0_15, %c0_16] : memref<16x128xf32, #tpu.memory_space<vmem>>, vector<16x128xf32>
      %c0_17 = arith.constant 0 : index
      %c0_18 = arith.constant 0 : index
      %21 = vector.load %arg6[%c0_17, %c0_18] : memref<1x128xf32, #tpu.memory_space<vmem>>, vector<1x128xf32>
      %22 = vector.broadcast %21 : vector<1x128xf32> to vector<16x128xf32>
      %23 = arith.addf %20, %22 : vector<16x128xf32>
      %24 = math.tanh %23 : vector<16x128xf32>
      %25 = arith.mulf %24, %24 : vector<16x128xf32>
      %cst_19 = arith.constant dense<0.000000e+00> : vector<16xf32>
      %26 = vector.multi_reduction <add>, %25, %cst_19 [1] : vector<16x128xf32> to vector<16xf32>
      %27 = vector.shape_cast %26 : vector<16xf32> to vector<16x1xf32>
      %cst_20 = arith.constant 1.000000e-24 : f32
      %28 = vector.broadcast %cst_20 : f32 to vector<16x1xf32>
      %29 = arith.maximumf %27, %28 : vector<16x1xf32>
      %30 = math.rsqrt %29 : vector<16x1xf32>
      %31 = vector.broadcast %30 : vector<16x1xf32> to vector<16x128xf32>
      %32 = arith.mulf %24, %31 : vector<16x128xf32>
      %c0_21 = arith.constant 0 : index
      %c0_22 = arith.constant 0 : index
      %33 = vector.load %arg7[%c0_21, %c0_22] : memref<16x128xf32, #tpu.memory_space<vmem>>, vector<16x128xf32>
      tpu.vector_store %arg7[%c0_21, %c0_22], %32 {strides = array<i32>} : memref<16x128xf32, #tpu.memory_space<vmem>>, vector<16x128xf32>,
    } else {
    }
    return
  }
  func.func @transform_0(%arg0: i32, %arg1: i32) -> (i32, i32) {
    %c0_i32 = arith.constant 0 : i32
    %c0_i32_0 = arith.constant 0 : i32
    return %arg0, %c0_i32 : i32, i32
  }
  func.func @transform_1(%arg0: i32, %arg1: i32) -> (i32, i32) {
    %c0_i32 = arith.constant 0 : i32
    %c0_i32_0 = arith.constant 0 : i32
    return %c0_i32, %arg1 : i32, i32
  }
  func.func @transform_2(%arg0: i32, %arg1: i32) -> (i32, i32) {
    %c0_i32 = arith.constant 0 : i32
    %c0_i32_0 = arith.constant 0 : i32
    return %c0_i32, %arg1 : i32, i32
  }
  func.func @transform_3(%arg0: i32, %arg1: i32) -> (i32, i32) {
    %c0_i32 = arith.constant 0 : i32
    %c0_i32_0 = arith.constant 0 : i32
    return %arg1, %c0_i32 : i32, i32
  }
  func.func @transform_4(%arg0: i32, %arg1: i32) -> (i32, i32) {
    %c0_i32 = arith.constant 0 : i32
    %c0_i32_0 = arith.constant 0 : i32
    %c0_i32_1 = arith.constant 0 : i32
    return %c0_i32, %c0_i32_0 : i32, i32
  }
  func.func @transform_5(%arg0: i32, %arg1: i32) -> (i32, i32) {
    %c0_i32 = arith.constant 0 : i32
    %c0_i32_0 = arith.constant 0 : i32
    return %arg0, %c0_i32 : i32, i32
  }
}

</mosaic_0001>

<llo_original>
// kernel: tpu_custom_call.1
$region0: #{tpu_custom_call.1}
  #allocation0 [shape = 'u32[]', space=smem, size = 0x4, offset = 0x4, fixed_abs, tag = 'smem constant byte address 0x4 - core index']
  #allocation1 [shape = 'u32[72,128]{1,0:T(1,128)}', space=vmem, size = 0x9000, scoped, tag = 'internal scratch']
  #allocation2 [shape = 'f32[16,128]{1,0:T(8,128)}', space=vmem, size = 0x2000, scoped, tag = 'scratch operand']
  %s0 = inlined_call_operand.hbm [shape: bf16[16,128], index: 0, kind: input, shape index: {}]
  %s1 = inlined_call_operand.hbm [shape: bf16[128,4096], index: 1, kind: input, shape index: {}]
  %s2 = inlined_call_operand.hbm [shape: f32[1,4096], index: 2, kind: input, shape index: {}]
  %s3 = inlined_call_operand.hbm [shape: bf16[4096,128], index: 3, kind: input, shape index: {}]
  %s4 = inlined_call_operand.vmem [shape: f32[1,128], index: 4, kind: input, shape index: {}]
  %s5 = inlined_call_operand.hbm [shape: f32[16,128], index: 5, kind: output, shape index: {}]
  %s6 = sld [smem:[#allocation0]]
  $region77: #{tpu_custom_call.1} parent=0
    _
  %s8 = ssub.s32 1, %s6
  %s9 = scalar_select 0, %s8, %s6
  $region1: #{tpu_custom_call.1} parent=0
    #allocation3 [shape = 'u8[4096]{0}', space=vmem, size = 0x1000, scoped, tag = 'input window, operand 0, single buffered']
    #allocation4 [shape = 's32[2]{0}', space=sflag, size = 0x8, scoped, tag = 'scoped memory for tpu_custom_call.1']
    #allocation5 [shape = 's32[2]{0}', space=sflag, size = 0x8, scoped, tag = 'scoped memory for tpu_custom_call.1']
    #allocation6 [shape = 'u8[262144]{0}', space=vmem, size = 0x40000, scoped, tag = 'input window, operand 1']
    #allocation7 [shape = 's32[2]{0}', space=sflag, size = 0x8, scoped, tag = 'scoped memory for tpu_custom_call.1']
    #allocation8 [shape = 'u8[4096]{0}', space=vmem, size = 0x1000, scoped, tag = 'input window, operand 2']
    #allocation9 [shape = 'u8[262144]{0}', space=vmem, size = 0x40000, scoped, tag = 'input window, operand 3']
    #allocation10 [shape = 's32[2]{0}', space=sflag, size = 0x8, scoped, tag = 'scoped memory for tpu_custom_call.1']
    #allocation11 [shape = 'u8[8192]{0}', space=vmem, size = 0x2000, scoped, tag = 'output window, operand 0, single buffered']
    %10 = vsyncpa [#allocation4], 0
    %11 = vsyncpa [#allocation7], 0
    %s12 = scalar_lea.sflag [#allocation7], 1
    %13 = vsyncpa %s12, 0
    %14 = vsyncpa [#allocation10], 0
    %s15 = scalar_lea.sflag [#allocation10], 1
    %16 = vsyncpa %s15, 0
    %17 = vsyncpa [#allocation5], 0
    loop: start=0, step=1, limit=10
    $region2: #{tpu_custom_call.1} parent=1 // loop_pre_header
      _
    $region3: #{tpu_custom_call.1} parent=1 // loop_header
      %s19 = sphi 0, %s23
      %p20 = scmp.ge.s32.totalorder %s19, 10
      %s26 = sphi 0, %s38
      %s27 = sphi 0, %s34
      %s28 = sphi 0, %s26
      %s29 = sphi 0, %s27
      %s30 = sphi 0, %s28
      %s31 = sphi 0, %s29
      %s41 = sphi 0, %s43
      %s44 = sphi 0, %s41
      %s45 = sphi 0, %s44
      %s61 = sphi 0, %s45
      %s67 = sphi 0, %s69
      %s70 = sphi 0, %s67
      %s71 = sphi 0, %s70
      %s87 = sphi 0, %s71
      %s93 = sphi 0, %s95
      %s96 = sphi 0, %s93
      %s97 = sphi 0, %s96
      %s113 = sphi 0, %s97
      %s119 = sphi 0, %s121
      %s122 = sphi 0, %s119
      %s123 = sphi 0, %s122
      %s139 = sphi 0, %s123
      %s143 = sphi 0, %s143
      %s145 = sphi 0, %s143
      %s146 = sphi 0, %s145
      %s160 = sphi 0, %s146
      %s166 = sphi 0, %s168
      %s169 = sphi 0, %s166
      %s170 = sphi 0, %s169
      %s186 = sphi 0, %s170
    $region4: #{tpu_custom_call.1} parent=1 // loop_header_branch
      %22 = sbr.rel (%p20) target = $region8
    $region5: #{tpu_custom_call.1} parent=1 // loop_body
      %s24 = ssub.s32 %s19, 1
      %s25 = ssub.s32 %s19, 2
      %s32 = sadd.s32 1, %s27
      %p33 = scmp.ge.s32.totalorder %s32, 8
      %s34 = scalar_select %p33, 0, %s32
      %s35 = sadd.s32 1, %s26
      %s36 = scalar_select %p33, %s35, %s26
      %p37 = scmp.ge.s32.totalorder %s36, 1
      %s38 = scalar_select %p37, 0, %s36
      %s39 = ssub.s32 %s26, %s38
      %p40 = scmp.eq.s32.totalorder %s39, 0
      %s42 = sadd.s32 %s41, 1
      %s43 = scalar_select %p40, %s41, %s42
      %p46 = pneg %p40
      %p47 = scmp.eq.s32.totalorder %s19, 7
      %p48 = por %p46, %p47
      %p49 = scmp.ne.s32.totalorder %s41, %s44
      %p50 = scmp.eq.s32.totalorder %s19, 0
      %p51 = por %p49, %p50
      %p52 = scmp.ne.s32.totalorder %s41, %s44
      %p53 = scmp.eq.s32.totalorder %s24, 7
      %p54 = por %p52, %p53
      %p55 = scmp.ne.s32.totalorder %s44, %s45
      %p56 = scmp.eq.s32.totalorder %s24, 0
      %p57 = por %p55, %p56
      %p58 = scmp.ne.s32.totalorder %s44, %s45
      %p59 = scmp.eq.s32.totalorder %s25, 7
      %p60 = por %p58, %p59
      %p62 = scmp.ne.s32.totalorder %s45, %s61
      %p63 = scmp.eq.s32.totalorder %s25, 0
      %p64 = por %p62, %p63
      %s65 = ssub.s32 %s27, %s34
      %p66 = scmp.eq.s32.totalorder %s65, 0
      %s68 = sadd.s32 %s67, 1
      %s69 = scalar_select %p66, %s67, %s68
      %p72 = pneg %p66
      %p73 = scmp.eq.s32.totalorder %s19, 7
      %p74 = por %p72, %p73
      %p75 = scmp.ne.s32.totalorder %s67, %s70
      %p76 = scmp.eq.s32.totalorder %s19, 0
      %p77 = por %p75, %p76
      %p78 = scmp.ne.s32.totalorder %s67, %s70
      %p79 = scmp.eq.s32.totalorder %s24, 7
      %p80 = por %p78, %p79
      %p81 = scmp.ne.s32.totalorder %s70, %s71
      %p82 = scmp.eq.s32.totalorder %s24, 0
      %p83 = por %p81, %p82
      %p84 = scmp.ne.s32.totalorder %s70, %s71
      %p85 = scmp.eq.s32.totalorder %s25, 7
      %p86 = por %p84, %p85
      %p88 = scmp.ne.s32.totalorder %s71, %s87
      %p89 = scmp.eq.s32.totalorder %s25, 0
      %p90 = por %p88, %p89
      %s91 = ssub.s32 %s27, %s34
      %p92 = scmp.eq.s32.totalorder %s91, 0
      %s94 = sadd.s32 %s93, 1
      %s95 = scalar_select %p92, %s93, %s94
      %p98 = pneg %p92
      %p99 = scmp.eq.s32.totalorder %s19, 7
      %p100 = por %p98, %p99
      %p101 = scmp.ne.s32.totalorder %s93, %s96
      %p102 = scmp.eq.s32.totalorder %s19, 0
      %p103 = por %p101, %p102
      %p104 = scmp.ne.s32.totalorder %s93, %s96
      %p105 = scmp.eq.s32.totalorder %s24, 7
      %p106 = por %p104, %p105
      %p107 = scmp.ne.s32.totalorder %s96, %s97
      %p108 = scmp.eq.s32.totalorder %s24, 0
      %p109 = por %p107, %p108
      %p110 = scmp.ne.s32.totalorder %s96, %s97
      %p111 = scmp.eq.s32.totalorder %s25, 7
      %p112 = por %p110, %p111
      %p114 = scmp.ne.s32.totalorder %s97, %s113
      %p115 = scmp.eq.s32.totalorder %s25, 0
      %p116 = por %p114, %p115
      %s117 = ssub.s32 %s27, %s34
      %p118 = scmp.eq.s32.totalorder %s117, 0
      %s120 = sadd.s32 %s119, 1
      %s121 = scalar_select %p118, %s119, %s120
      %p124 = pneg %p118
      %p125 = scmp.eq.s32.totalorder %s19, 7
      %p126 = por %p124, %p125
      %p127 = scmp.ne.s32.totalorder %s119, %s122
      %p128 = scmp.eq.s32.totalorder %s19, 0
      %p129 = por %p127, %p128
      %p130 = scmp.ne.s32.totalorder %s119, %s122
      %p131 = scmp.eq.s32.totalorder %s24, 7
      %p132 = por %p130, %p131
      %p133 = scmp.ne.s32.totalorder %s122, %s123
      %p134 = scmp.eq.s32.totalorder %s24, 0
      %p135 = por %p133, %p134
      %p136 = scmp.ne.s32.totalorder %s122, %s123
      %p137 = scmp.eq.s32.totalorder %s25, 7
      %p138 = por %p136, %p137
      %p140 = scmp.ne.s32.totalorder %s123, %s139
      %p141 = scmp.eq.s32.totalorder %s25, 0
      %p142 = por %p140, %p141
      %s144 = sadd.s32 %s143, 1
      %p147 = scmp.eq.s32.totalorder %s19, 7
      %p148 = scmp.ne.s32.totalorder %s143, %s145
      %p149 = scmp.eq.s32.totalorder %s19, 0
      %p150 = por %p148, %p149
      %p151 = scmp.ne.s32.totalorder %s143, %s145
      %p152 = scmp.eq.s32.totalorder %s24, 7
      %p153 = por %p151, %p152
      %p154 = scmp.ne.s32.totalorder %s145, %s146
      %p155 = scmp.eq.s32.totalorder %s24, 0
      %p156 = por %p154, %p155
      %p157 = scmp.ne.s32.totalorder %s145, %s146
      %p158 = scmp.eq.s32.totalorder %s25, 7
      %p159 = por %p157, %p158
      %p161 = scmp.ne.s32.totalorder %s146, %s160
      %p162 = scmp.eq.s32.totalorder %s25, 0
      %p163 = por %p161, %p162
      %s164 = ssub.s32 %s26, %s38
      %p165 = scmp.eq.s32.totalorder %s164, 0
      %s167 = sadd.s32 %s166, 1
      %s168 = scalar_select %p165, %s166, %s167
      %p171 = pneg %p165
      %p172 = scmp.eq.s32.totalorder %s19, 7
      %p173 = por %p171, %p172
      %p174 = scmp.ne.s32.totalorder %s166, %s169
      %p175 = scmp.eq.s32.totalorder %s19, 0
      %p176 = por %p174, %p175
      %p177 = scmp.ne.s32.totalorder %s166, %s169
      %p178 = scmp.eq.s32.totalorder %s24, 7
      %p179 = por %p177, %p178
      %p180 = scmp.ne.s32.totalorder %s169, %s170
      %p181 = scmp.eq.s32.totalorder %s24, 0
      %p182 = por %p180, %p181
      %p183 = scmp.ne.s32.totalorder %s169, %s170
      %p184 = scmp.eq.s32.totalorder %s25, 7
      %p185 = por %p183, %p184
      %p187 = scmp.ne.s32.totalorder %s170, %s186
      %p188 = scmp.eq.s32.totalorder %s25, 0
      %p189 = por %p187, %p188
      %p190 = scmp.le.s32.totalorder 1, %s19
      %p191 = scmp.lt.s32.totalorder %s19, 9
      %p192 = pnand %p190, %p191
      %p193 = pneg %p192
      // Predicated region
      $region9: #{tpu_custom_call.1} parent=5 // pred_check
        _
      $region10: #{tpu_custom_call.1} parent=5 // pred_check_branch
        %195 = sbr.rel (%p192) target = $region12
      $region11: #{tpu_custom_call.1} parent=5 // pred_region
        %s196 = ssub.s32 %s19, 1
        // Predicated region
        $region13: #{tpu_custom_call.1} parent=11 // pred_check
          %p197 = pneg %p57
        $region14: #{tpu_custom_call.1} parent=11 // pred_check_branch
          %199 = sbr.rel (%p197) target = $region16
        $region15: #{tpu_custom_call.1} parent=11 // pred_region
          %s200 = smul.u32 2, %s28
          %202 = vsyncadd [#allocation4], 0
          %s203 = smul.addr %s200, 4
          %s204 = scalar_lea.hbm %s0, %s203
          %s205 = sshll.u32 %s204, 4
          %s206 = int_to_ptr.hbm [resolvable:$true] %s205
          %s207 = sshll.u32 [#allocation3], 4
          %s208 = int_to_ptr.vmem [resolvable:$true] %s207
          %213 = dma.hbm_to_vmem [thread:$0]  %s206, 128, %s208, [#allocation4], 64, 64, 4
        $region16: #{tpu_custom_call.1} parent=11 // pred_fallthru
          _
        // Predicated region
        $region17: #{tpu_custom_call.1} parent=11 // pred_check
          %p214 = pneg %p156
        $region18: #{tpu_custom_call.1} parent=11 // pred_check_branch
          %216 = sbr.rel (%p214) target = $region20
        $region19: #{tpu_custom_call.1} parent=11 // pred_region
          _
        $region20: #{tpu_custom_call.1} parent=11 // pred_fallthru
          _
      $region12: #{tpu_custom_call.1} parent=5 // pred_fallthru
        _
      %p217 = scmp.lt.s32.totalorder %s19, 8
      // Predicated region
      $region21: #{tpu_custom_call.1} parent=5 // pred_check
        %p218 = pneg %p217
      $region22: #{tpu_custom_call.1} parent=5 // pred_check_branch
        %220 = sbr.rel (%p218) target = $region24
      $region23: #{tpu_custom_call.1} parent=5 // pred_region
        // Predicated region
        $region25: #{tpu_custom_call.1} parent=23 // pred_check
          %p221 = pneg %p77
        $region26: #{tpu_custom_call.1} parent=23 // pred_check_branch
          %223 = sbr.rel (%p221) target = $region28
        $region27: #{tpu_custom_call.1} parent=23 // pred_region
          %s224 = sand.u32 %s19, 1
          %s225 = scalar_lea.sflag [#allocation7], %s224
          %s226 = sand.u32 %s67, 1
          %s227 = smul.addr %s226, 256
          %s228 = scalar_lea.vmem [#allocation6], %s227
          %s229 = smul.u32 4, %s27
          %231 = vsyncadd %s225, 0
          %s232 = smul.addr %s229, 4
          %s233 = scalar_lea.hbm %s1, %s232
          %s234 = sshll.u32 %s233, 4
          %s235 = int_to_ptr.hbm [resolvable:$true] %s234
          %s236 = sshll.u32 %s228, 4
          %s237 = int_to_ptr.vmem [resolvable:$true] %s236
          %242 = dma.hbm_to_vmem [thread:$0]  %s235, 4096, %s237, %s225, 2048, 256, 16
        $region28: #{tpu_custom_call.1} parent=23 // pred_fallthru
          _
        // Predicated region
        $region29: #{tpu_custom_call.1} parent=23 // pred_check
          %p243 = pneg %p103
        $region30: #{tpu_custom_call.1} parent=23 // pred_check_branch
          %245 = sbr.rel (%p243) target = $region32
        $region31: #{tpu_custom_call.1} parent=23 // pred_region
          %s246 = sand.u32 %s19, 1
          %s247 = scalar_lea.sflag [#allocation7], %s246
          %s248 = sand.u32 %s93, 1
          %s249 = smul.addr %s248, 4
          %s250 = scalar_lea.vmem [#allocation8], %s249
          %s251 = smul.u32 4, %s27
          %253 = vsyncadd %s247, 0
          %s254 = scalar_lea.hbm %s2, %s251
          %s256 = sshll.u32 %s254, 4
          %s257 = int_to_ptr.hbm [resolvable:$true] %s256
          %s258 = sshll.u32 %s250, 4
          %s259 = int_to_ptr.vmem [resolvable:$true] %s258
          %261 = dma.hbm_to_vmem [thread:$0]  %s257, 64, %s259, %s247
        $region32: #{tpu_custom_call.1} parent=23 // pred_fallthru
          _
        // Predicated region
        $region33: #{tpu_custom_call.1} parent=23 // pred_check
          %p262 = pneg %p129
        $region34: #{tpu_custom_call.1} parent=23 // pred_check_branch
          %264 = sbr.rel (%p262) target = $region36
        $region35: #{tpu_custom_call.1} parent=23 // pred_region
          %s265 = sand.u32 %s119, 1
          %s266 = scalar_lea.sflag [#allocation10], %s265
          %s267 = sand.u32 %s119, 1
          %s268 = smul.addr %s267, 256
          %s269 = scalar_lea.vmem [#allocation9], %s268
          %s270 = smul.u32 64, %s27
          %272 = vsyncadd %s266, 0
          %s273 = smul.addr %s270, 4
          %s274 = scalar_lea.hbm %s3, %s273
          %s275 = sshll.u32 %s274, 4
          %s276 = int_to_ptr.hbm [resolvable:$true] %s275
          %s277 = sshll.u32 %s269, 4
          %s278 = int_to_ptr.vmem [resolvable:$true] %s277
          %283 = dma.hbm_to_vmem [thread:$0]  %s276, 4096, %s278, %s266, 64, 64, 4
        $region36: #{tpu_custom_call.1} parent=23 // pred_fallthru
          _
      $region24: #{tpu_custom_call.1} parent=5 // pred_fallthru
        _
      %p284 = scmp.le.s32.totalorder 1, %s19
      %p285 = scmp.lt.s32.totalorder %s19, 9
      %p286 = pnand %p284, %p285
      %p287 = pneg %p286
      // Predicated region
      $region37: #{tpu_custom_call.1} parent=5 // pred_check
        _
      $region38: #{tpu_custom_call.1} parent=5 // pred_check_branch
        %289 = sbr.rel (%p286) target = $region40
      $region39: #{tpu_custom_call.1} parent=5 // pred_region
        %s290 = ssub.s32 %s19, 1
        // Predicated region
        $region41: #{tpu_custom_call.1} parent=39 // pred_check
          %p291 = pneg %p57
        $region42: #{tpu_custom_call.1} parent=39 // pred_check_branch
          %293 = sbr.rel (%p291) target = $region44
        $region43: #{tpu_custom_call.1} parent=39 // pred_region
          %295 = dma.done [#allocation4], 128
        $region44: #{tpu_custom_call.1} parent=39 // pred_fallthru
          _
        %s296 = sand.u32 %s24, 1
        %s297 = scalar_lea.sflag [#allocation7], %s296
        %s298 = sand.u32 %s70, 1
        %s299 = smul.addr %s298, 256
        %s300 = scalar_lea.vmem [#allocation6], %s299
        // Predicated region
        $region45: #{tpu_custom_call.1} parent=39 // pred_check
          %p301 = pneg %p83
        $region46: #{tpu_custom_call.1} parent=39 // pred_check_branch
          %303 = sbr.rel (%p301) target = $region48
        $region47: #{tpu_custom_call.1} parent=39 // pred_region
          %305 = dma.done %s297, 4096
        $region48: #{tpu_custom_call.1} parent=39 // pred_fallthru
          _
        %s306 = sand.u32 %s24, 1
        %s307 = scalar_lea.sflag [#allocation7], %s306
        %s308 = sand.u32 %s96, 1
        %s309 = smul.addr %s308, 4
        %s310 = scalar_lea.vmem [#allocation8], %s309
        // Predicated region
        $region49: #{tpu_custom_call.1} parent=39 // pred_check
          %p311 = pneg %p109
        $region50: #{tpu_custom_call.1} parent=39 // pred_check_branch
          %313 = sbr.rel (%p311) target = $region52
        $region51: #{tpu_custom_call.1} parent=39 // pred_region
          %315 = dma.done %s307, 64
        $region52: #{tpu_custom_call.1} parent=39 // pred_fallthru
          _
        %s316 = sand.u32 %s122, 1
        %s317 = scalar_lea.sflag [#allocation10], %s316
        %s318 = sand.u32 %s122, 1
        %s319 = smul.addr %s318, 256
        %s320 = scalar_lea.vmem [#allocation9], %s319
        // Predicated region
        $region53: #{tpu_custom_call.1} parent=39 // pred_check
          %p321 = pneg %p135
        $region54: #{tpu_custom_call.1} parent=39 // pred_check_branch
          %323 = sbr.rel (%p321) target = $region56
        $region55: #{tpu_custom_call.1} parent=39 // pred_region
          %325 = dma.done %s317, 4096
        $region56: #{tpu_custom_call.1} parent=39 // pred_fallthru
          _
        %p326 = pneg %p57
        %p327 = pneg %p54
        %s328 = sand.u32 %s24, 1
        %s329 = scalar_lea.sflag [#allocation7], %s328
        %s330 = sand.u32 %s70, 1
        %s331 = smul.addr %s330, 256
        %s332 = scalar_lea.vmem [#allocation6], %s331
        %p333 = pneg %p83
        %p334 = pneg %p80
        %s335 = sand.u32 %s24, 1
        %s336 = scalar_lea.sflag [#allocation7], %s335
        %s337 = sand.u32 %s96, 1
        %s338 = smul.addr %s337, 4
        %s339 = scalar_lea.vmem [#allocation8], %s338
        %p340 = pneg %p109
        %p341 = pneg %p106
        %s342 = sand.u32 %s122, 1
        %s343 = scalar_lea.sflag [#allocation10], %s342
        %s344 = sand.u32 %s122, 1
        %s345 = smul.addr %s344, 256
        %s346 = scalar_lea.vmem [#allocation9], %s345
        %p347 = pneg %p135
        %p348 = pneg %p132
        %p349 = pneg %p156
        %p350 = pneg %p153
        %p351 = pneg %p182
        %p352 = pneg %p179
        %s353 = smul.u32 2, %s28
        %s354 = smul.u32 4, %s29
        %s355 = smul.u32 4, %s29
        %s356 = smul.u32 64, %s29
        %s357 = smul.u32 2, %s28
        %p358 = scmp.eq.s32.totalorder %s29, 0
        // Predicated region
        $region57: #{tpu_custom_call.1} parent=39 // pred_check
          %p359 = pneg %p358
        $region58: #{tpu_custom_call.1} parent=39 // pred_check_branch
          %361 = sbr.rel (%p359) target = $region60
        $region59: #{tpu_custom_call.1} parent=39 // pred_region
          %362 = vst [vmem:[#allocation2] sm:$0xff] 0.0
          %363 = vst [vmem:[#allocation2 + $0x8] sm:$0xff] 0.0
        $region60: #{tpu_custom_call.1} parent=39 // pred_fallthru
          _
        %v364 = vld [vmem:[#allocation3] sm:$0xf]
        %v365 = vld [vmem:[#allocation3 + $0x4] sm:$0xf]
        %v366 = vld [vmem:[%s300] sm:$0xff]
        %v367 = vld [vmem:[%s300 + $0x8] sm:$0xff]
        %v368 = vld [vmem:[%s300 + $0x10] sm:$0xff]
        %v369 = vld [vmem:[%s300 + $0x18] sm:$0xff]
        %v370 = vld [vmem:[%s300 + $0x20] sm:$0xff]
        %v371 = vld [vmem:[%s300 + $0x28] sm:$0xff]
        %v372 = vld [vmem:[%s300 + $0x30] sm:$0xff]
        %v373 = vld [vmem:[%s300 + $0x38] sm:$0xff]
        %v374 = vld [vmem:[%s300 + $0x40] sm:$0xff]
        %v375 = vld [vmem:[%s300 + $0x48] sm:$0xff]
        %v376 = vld [vmem:[%s300 + $0x50] sm:$0xff]
        %v377 = vld [vmem:[%s300 + $0x58] sm:$0xff]
        %v378 = vld [vmem:[%s300 + $0x60] sm:$0xff]
        %v379 = vld [vmem:[%s300 + $0x68] sm:$0xff]
        %v380 = vld [vmem:[%s300 + $0x70] sm:$0xff]
        %v381 = vld [vmem:[%s300 + $0x78] sm:$0xff]
        %v382 = vld [vmem:[%s300 + $0x80] sm:$0xff]
        %v383 = vld [vmem:[%s300 + $0x88] sm:$0xff]
        %v384 = vld [vmem:[%s300 + $0x90] sm:$0xff]
        %v385 = vld [vmem:[%s300 + $0x98] sm:$0xff]
        %v386 = vld [vmem:[%s300 + $0xa0] sm:$0xff]
        %v387 = vld [vmem:[%s300 + $0xa8] sm:$0xff]
        %v388 = vld [vmem:[%s300 + $0xb0] sm:$0xff]
        %v389 = vld [vmem:[%s300 + $0xb8] sm:$0xff]
        %v390 = vld [vmem:[%s300 + $0xc0] sm:$0xff]
        %v391 = vld [vmem:[%s300 + $0xc8] sm:$0xff]
        %v392 = vld [vmem:[%s300 + $0xd0] sm:$0xff]
        %v393 = vld [vmem:[%s300 + $0xd8] sm:$0xff]
        %v394 = vld [vmem:[%s300 + $0xe0] sm:$0xff]
        %v395 = vld [vmem:[%s300 + $0xe8] sm:$0xff]
        %v396 = vld [vmem:[%s300 + $0xf0] sm:$0xff]
        %v397 = vld [vmem:[%s300 + $0xf8] sm:$0xff]
        %v398 = vld [vmem:[%s310] sm:$0xf]
        %v400 = vperm.slane %v398, 0
        %v401 = vperm.slane %v398, 1
        %v402 = vperm.slane %v398, 2
        %v403 = vperm.slane %v398, 3
        %v410 = vunpack.c.l.b16 %v364
        %v411 = vunpack.c.l.b16 %v365
        %v412 = vpack.c.b16 %v411, %v410
        %v446 = vunpack.c.l.b16 %v366
        %v447 = vunpack.c.h.b16 %v366
        %v448 = vunpack.c.l.b16 %v367
        %v449 = vunpack.c.h.b16 %v367
        %v450 = vunpack.c.l.b16 %v368
        %v451 = vunpack.c.h.b16 %v368
        %v452 = vunpack.c.l.b16 %v369
        %v453 = vunpack.c.h.b16 %v369
        %v454 = vunpack.c.l.b16 %v370
        %v455 = vunpack.c.h.b16 %v370
        %v456 = vunpack.c.l.b16 %v371
        %v457 = vunpack.c.h.b16 %v371
        %v458 = vunpack.c.l.b16 %v372
        %v459 = vunpack.c.h.b16 %v372
        %v460 = vunpack.c.l.b16 %v373
        %v461 = vunpack.c.h.b16 %v373
        %v462 = vunpack.c.l.b16 %v374
        %v463 = vunpack.c.h.b16 %v374
        %v464 = vunpack.c.l.b16 %v375
        %v465 = vunpack.c.h.b16 %v375
        %v466 = vunpack.c.l.b16 %v376
        %v467 = vunpack.c.h.b16 %v376
        %v468 = vunpack.c.l.b16 %v377
        %v469 = vunpack.c.h.b16 %v377
        %v470 = vunpack.c.l.b16 %v378
        %v471 = vunpack.c.h.b16 %v378
        %v472 = vunpack.c.l.b16 %v379
        %v473 = vunpack.c.h.b16 %v379
        %v474 = vunpack.c.l.b16 %v380
        %v475 = vunpack.c.h.b16 %v380
        %v476 = vunpack.c.l.b16 %v381
        %v477 = vunpack.c.h.b16 %v381
        %v478 = vunpack.c.l.b16 %v382
        %v479 = vunpack.c.h.b16 %v382
        %v480 = vunpack.c.l.b16 %v383
        %v481 = vunpack.c.h.b16 %v383
        %v482 = vunpack.c.l.b16 %v384
        %v483 = vunpack.c.h.b16 %v384
        %v484 = vunpack.c.l.b16 %v385
        %v485 = vunpack.c.h.b16 %v385
        %v486 = vunpack.c.l.b16 %v386
        %v487 = vunpack.c.h.b16 %v386
        %v488 = vunpack.c.l.b16 %v387
        %v489 = vunpack.c.h.b16 %v387
        %v490 = vunpack.c.l.b16 %v388
        %v491 = vunpack.c.h.b16 %v388
        %v492 = vunpack.c.l.b16 %v389
        %v493 = vunpack.c.h.b16 %v389
        %v494 = vunpack.c.l.b16 %v390
        %v495 = vunpack.c.h.b16 %v390
        %v496 = vunpack.c.l.b16 %v391
        %v497 = vunpack.c.h.b16 %v391
        %v498 = vunpack.c.l.b16 %v392
        %v499 = vunpack.c.h.b16 %v392
        %v500 = vunpack.c.l.b16 %v393
        %v501 = vunpack.c.h.b16 %v393
        %v502 = vunpack.c.l.b16 %v394
        %v503 = vunpack.c.h.b16 %v394
        %v504 = vunpack.c.l.b16 %v395
        %v505 = vunpack.c.h.b16 %v395
        %v506 = vunpack.c.l.b16 %v396
        %v507 = vunpack.c.h.b16 %v396
        %v508 = vunpack.c.l.b16 %v397
        %v509 = vunpack.c.h.b16 %v397
        %v510 = vpack.c.b16 %v450, %v446
        %v511 = vpack.c.b16 %v451, %v447
        %v512 = vpack.c.b16 %v452, %v448
        %v513 = vpack.c.b16 %v453, %v449
        %v514 = vpack.c.b16 %v458, %v454
        %v515 = vpack.c.b16 %v459, %v455
        %v516 = vpack.c.b16 %v460, %v456
        %v517 = vpack.c.b16 %v461, %v457
        %v518 = vpack.c.b16 %v466, %v462
        %v519 = vpack.c.b16 %v467, %v463
        %v520 = vpack.c.b16 %v468, %v464
        %v521 = vpack.c.b16 %v469, %v465
        %v522 = vpack.c.b16 %v474, %v470
        %v523 = vpack.c.b16 %v475, %v471
        %v524 = vpack.c.b16 %v476, %v472
        %v525 = vpack.c.b16 %v477, %v473
        %v526 = vpack.c.b16 %v482, %v478
        %v527 = vpack.c.b16 %v483, %v479
        %v528 = vpack.c.b16 %v484, %v480
        %v529 = vpack.c.b16 %v485, %v481
        %v530 = vpack.c.b16 %v490, %v486
        %v531 = vpack.c.b16 %v491, %v487
        %v532 = vpack.c.b16 %v492, %v488
        %v533 = vpack.c.b16 %v493, %v489
        %v534 = vpack.c.b16 %v498, %v494
        %v535 = vpack.c.b16 %v499, %v495
        %v536 = vpack.c.b16 %v500, %v496
        %v537 = vpack.c.b16 %v501, %v497
        %v538 = vpack.c.b16 %v506, %v502
        %v539 = vpack.c.b16 %v507, %v503
        %v540 = vpack.c.b16 %v508, %v504
        %v541 = vpack.c.b16 %v509, %v505
        %574 = vmatpush.bf16.msra.mxu0 %v538
        %575 = vmatpush.bf16.msra.mxu0 %v534
        %576 = vmatpush.bf16.msra.mxu0 %v530
        %577 = vmatpush.bf16.msra.mxu0 %v526
        %578 = vmatpush.bf16.msra.mxu0 %v522
        %579 = vmatpush.bf16.msra.mxu0 %v518
        %580 = vmatpush.bf16.msra.mxu0 %v514
        %581 = vmatpush.bf16.msra.mxu0 %v510
        %582 = vmatmul.bf16.gmra.mxu0 %v412
        %v583 = vpop.f32.mrf.mxu0
        %v584 = vadd.f32 %v400, %v583
        %v585 = vpop.f32.mrf.mxu0
        %v586 = vadd.f32 %v400, %v585
        %587 = vdwg.mxu0
        %588 = vmatpush.bf16.msra.mxu0 %v539
        %589 = vmatpush.bf16.msra.mxu0 %v535
        %590 = vmatpush.bf16.msra.mxu0 %v531
        %591 = vmatpush.bf16.msra.mxu0 %v527
        %592 = vmatpush.bf16.msra.mxu0 %v523
        %593 = vmatpush.bf16.msra.mxu0 %v519
        %594 = vmatpush.bf16.msra.mxu0 %v515
        %595 = vmatpush.bf16.msra.mxu0 %v511
        %596 = vmatmul.bf16.gmra.mxu0 %v412
        %v597 = vpop.f32.mrf.mxu0
        %v598 = vadd.f32 %v401, %v597
        %v599 = vpop.f32.mrf.mxu0
        %v600 = vadd.f32 %v401, %v599
        %601 = vdwg.mxu0
        %602 = vmatpush.bf16.msra.mxu0 %v540
        %603 = vmatpush.bf16.msra.mxu0 %v536
        %604 = vmatpush.bf16.msra.mxu0 %v532
        %605 = vmatpush.bf16.msra.mxu0 %v528
        %606 = vmatpush.bf16.msra.mxu0 %v524
        %607 = vmatpush.bf16.msra.mxu0 %v520
        %608 = vmatpush.bf16.msra.mxu0 %v516
        %609 = vmatpush.bf16.msra.mxu0 %v512
        %610 = vmatmul.bf16.gmra.mxu0 %v412
        %v611 = vpop.f32.mrf.mxu0
        %v612 = vadd.f32 %v402, %v611
        %v613 = vpop.f32.mrf.mxu0
        %v614 = vadd.f32 %v402, %v613
        %615 = vdwg.mxu0
        %616 = vmatpush.bf16.msra.mxu0 %v541
        %617 = vmatpush.bf16.msra.mxu0 %v537
        %618 = vmatpush.bf16.msra.mxu0 %v533
        %619 = vmatpush.bf16.msra.mxu0 %v529
        %620 = vmatpush.bf16.msra.mxu0 %v525
        %621 = vmatpush.bf16.msra.mxu0 %v521
        %622 = vmatpush.bf16.msra.mxu0 %v517
        %623 = vmatpush.bf16.msra.mxu0 %v513
        %624 = vmatmul.bf16.gmra.mxu0 %v412
        %v625 = vpop.f32.mrf.mxu0
        %v626 = vadd.f32 %v403, %v625
        %v627 = vpop.f32.mrf.mxu0
        %v628 = vadd.f32 %v403, %v627
        %629 = vdwg.mxu0
        %v630 = vmax.f32 %v584, 0.0
        %v631 = vmax.f32 %v598, 0.0
        %v632 = vmax.f32 %v612, 0.0
        %v633 = vmax.f32 %v626, 0.0
        %v634 = vmax.f32 %v586, 0.0
        %v635 = vmax.f32 %v600, 0.0
        %v636 = vmax.f32 %v614, 0.0
        %v637 = vmax.f32 %v628, 0.0
        %v638 = vld [vmem:[#allocation2] sm:$0xff]
        %v639 = vld [vmem:[#allocation2 + $0x8] sm:$0xff]
        %v640 = vpack.c.bf16 %v634, %v630
        %v641 = vpack.c.bf16 %v635, %v631
        %v642 = vpack.c.bf16 %v636, %v632
        %v643 = vpack.c.bf16 %v637, %v633
        %v644 = vld [vmem:[%s320] sm:$0xf]
        %v645 = vld [vmem:[%s320 + $0x4] sm:$0xf]
        %v646 = vld [vmem:[%s320 + $0x8] sm:$0xf]
        %v647 = vld [vmem:[%s320 + $0xc] sm:$0xf]
        %v648 = vld [vmem:[%s320 + $0x10] sm:$0xf]
        %v649 = vld [vmem:[%s320 + $0x14] sm:$0xf]
        %v650 = vld [vmem:[%s320 + $0x18] sm:$0xf]
        %v651 = vld [vmem:[%s320 + $0x1c] sm:$0xf]
        %v652 = vld [vmem:[%s320 + $0x20] sm:$0xf]
        %v653 = vld [vmem:[%s320 + $0x24] sm:$0xf]
        %v654 = vld [vmem:[%s320 + $0x28] sm:$0xf]
        %v655 = vld [vmem:[%s320 + $0x2c] sm:$0xf]
        %v656 = vld [vmem:[%s320 + $0x30] sm:$0xf]
        %v657 = vld [vmem:[%s320 + $0x34] sm:$0xf]
        %v658 = vld [vmem:[%s320 + $0x38] sm:$0xf]
        %v659 = vld [vmem:[%s320 + $0x3c] sm:$0xf]
        %v660 = vld [vmem:[%s320 + $0x40] sm:$0xf]
        %v661 = vld [vmem:[%s320 + $0x44] sm:$0xf]
        %v662 = vld [vmem:[%s320 + $0x48] sm:$0xf]
        %v663 = vld [vmem:[%s320 + $0x4c] sm:$0xf]
        %v664 = vld [vmem:[%s320 + $0x50] sm:$0xf]
        %v665 = vld [vmem:[%s320 + $0x54] sm:$0xf]
        %v666 = vld [vmem:[%s320 + $0x58] sm:$0xf]
        %v667 = vld [vmem:[%s320 + $0x5c] sm:$0xf]
        %v668 = vld [vmem:[%s320 + $0x60] sm:$0xf]
        %v669 = vld [vmem:[%s320 + $0x64] sm:$0xf]
        %v670 = vld [vmem:[%s320 + $0x68] sm:$0xf]
        %v671 = vld [vmem:[%s320 + $0x6c] sm:$0xf]
        %v672 = vld [vmem:[%s320 + $0x70] sm:$0xf]
        %v673 = vld [vmem:[%s320 + $0x74] sm:$0xf]
        %v674 = vld [vmem:[%s320 + $0x78] sm:$0xf]
        %v675 = vld [vmem:[%s320 + $0x7c] sm:$0xf]
        %v676 = vld [vmem:[%s320 + $0x80] sm:$0xf]
        %v677 = vld [vmem:[%s320 + $0x84] sm:$0xf]
        %v678 = vld [vmem:[%s320 + $0x88] sm:$0xf]
        %v679 = vld [vmem:[%s320 + $0x8c] sm:$0xf]
        %v680 = vld [vmem:[%s320 + $0x90] sm:$0xf]
        %v681 = vld [vmem:[%s320 + $0x94] sm:$0xf]
        %v682 = vld [vmem:[%s320 + $0x98] sm:$0xf]
        %v683 = vld [vmem:[%s320 + $0x9c] sm:$0xf]
        %v684 = vld [vmem:[%s320 + $0xa0] sm:$0xf]
        %v685 = vld [vmem:[%s320 + $0xa4] sm:$0xf]
        %v686 = vld [vmem:[%s320 + $0xa8] sm:$0xf]
        %v687 = vld [vmem:[%s320 + $0xac] sm:$0xf]
        %v688 = vld [vmem:[%s320 + $0xb0] sm:$0xf]
        %v689 = vld [vmem:[%s320 + $0xb4] sm:$0xf]
        %v690 = vld [vmem:[%s320 + $0xb8] sm:$0xf]
        %v691 = vld [vmem:[%s320 + $0xbc] sm:$0xf]
        %v692 = vld [vmem:[%s320 + $0xc0] sm:$0xf]
        %v693 = vld [vmem:[%s320 + $0xc4] sm:$0xf]
        %v694 = vld [vmem:[%s320 + $0xc8] sm:$0xf]
        %v695 = vld [vmem:[%s320 + $0xcc] sm:$0xf]
        %v696 = vld [vmem:[%s320 + $0xd0] sm:$0xf]
        %v697 = vld [vmem:[%s320 + $0xd4] sm:$0xf]
        %v698 = vld [vmem:[%s320 + $0xd8] sm:$0xf]
        %v699 = vld [vmem:[%s320 + $0xdc] sm:$0xf]
        %v700 = vld [vmem:[%s320 + $0xe0] sm:$0xf]
        %v701 = vld [vmem:[%s320 + $0xe4] sm:$0xf]
        %v702 = vld [vmem:[%s320 + $0xe8] sm:$0xf]
        %v703 = vld [vmem:[%s320 + $0xec] sm:$0xf]
        %v704 = vld [vmem:[%s320 + $0xf0] sm:$0xf]
        %v705 = vld [vmem:[%s320 + $0xf4] sm:$0xf]
        %v706 = vld [vmem:[%s320 + $0xf8] sm:$0xf]
        %v707 = vld [vmem:[%s320 + $0xfc] sm:$0xf]
        %v772 = vunpack.c.l.b16 %v644
        %v773 = vunpack.c.l.b16 %v645
        %v774 = vunpack.c.l.b16 %v646
        %v775 = vunpack.c.l.b16 %v647
        %v776 = vunpack.c.l.b16 %v648
        %v777 = vunpack.c.l.b16 %v649
        %v778 = vunpack.c.l.b16 %v650
        %v779 = vunpack.c.l.b16 %v651
        %v780 = vunpack.c.l.b16 %v652
        %v781 = vunpack.c.l.b16 %v653
        %v782 = vunpack.c.l.b16 %v654
        %v783 = vunpack.c.l.b16 %v655
        %v784 = vunpack.c.l.b16 %v656
        %v785 = vunpack.c.l.b16 %v657
        %v786 = vunpack.c.l.b16 %v658
        %v787 = vunpack.c.l.b16 %v659
        %v788 = vunpack.c.l.b16 %v660
        %v789 = vunpack.c.l.b16 %v661
        %v790 = vunpack.c.l.b16 %v662
        %v791 = vunpack.c.l.b16 %v663
        %v792 = vunpack.c.l.b16 %v664
        %v793 = vunpack.c.l.b16 %v665
        %v794 = vunpack.c.l.b16 %v666
        %v795 = vunpack.c.l.b16 %v667
        %v796 = vunpack.c.l.b16 %v668
        %v797 = vunpack.c.l.b16 %v669
        %v798 = vunpack.c.l.b16 %v670
        %v799 = vunpack.c.l.b16 %v671
        %v800 = vunpack.c.l.b16 %v672
        %v801 = vunpack.c.l.b16 %v673
        %v802 = vunpack.c.l.b16 %v674
        %v803 = vunpack.c.l.b16 %v675
        %v804 = vunpack.c.l.b16 %v676
        %v805 = vunpack.c.l.b16 %v677
        %v806 = vunpack.c.l.b16 %v678
        %v807 = vunpack.c.l.b16 %v679
        %v808 = vunpack.c.l.b16 %v680
        %v809 = vunpack.c.l.b16 %v681
        %v810 = vunpack.c.l.b16 %v682
        %v811 = vunpack.c.l.b16 %v683
        %v812 = vunpack.c.l.b16 %v684
        %v813 = vunpack.c.l.b16 %v685
        %v814 = vunpack.c.l.b16 %v686
        %v815 = vunpack.c.l.b16 %v687
        %v816 = vunpack.c.l.b16 %v688
        %v817 = vunpack.c.l.b16 %v689
        %v818 = vunpack.c.l.b16 %v690
        %v819 = vunpack.c.l.b16 %v691
        %v820 = vunpack.c.l.b16 %v692
        %v821 = vunpack.c.l.b16 %v693
        %v822 = vunpack.c.l.b16 %v694
        %v823 = vunpack.c.l.b16 %v695
        %v824 = vunpack.c.l.b16 %v696
        %v825 = vunpack.c.l.b16 %v697
        %v826 = vunpack.c.l.b16 %v698
        %v827 = vunpack.c.l.b16 %v699
        %v828 = vunpack.c.l.b16 %v700
        %v829 = vunpack.c.l.b16 %v701
        %v830 = vunpack.c.l.b16 %v702
        %v831 = vunpack.c.l.b16 %v703
        %v832 = vunpack.c.l.b16 %v704
        %v833 = vunpack.c.l.b16 %v705
        %v834 = vunpack.c.l.b16 %v706
        %v835 = vunpack.c.l.b16 %v707
        %v836 = vpack.c.b16 %v773, %v772
        %v837 = vpack.c.b16 %v775, %v774
        %v838 = vpack.c.b16 %v777, %v776
        %v839 = vpack.c.b16 %v779, %v778
        %v840 = vpack.c.b16 %v781, %v780
        %v841 = vpack.c.b16 %v783, %v782
        %v842 = vpack.c.b16 %v785, %v784
        %v843 = vpack.c.b16 %v787, %v786
        %v844 = vpack.c.b16 %v789, %v788
        %v845 = vpack.c.b16 %v791, %v790
        %v846 = vpack.c.b16 %v793, %v792
        %v847 = vpack.c.b16 %v795, %v794
        %v848 = vpack.c.b16 %v797, %v796
        %v849 = vpack.c.b16 %v799, %v798
        %v850 = vpack.c.b16 %v801, %v800
        %v851 = vpack.c.b16 %v803, %v802
        %v852 = vpack.c.b16 %v805, %v804
        %v853 = vpack.c.b16 %v807, %v806
        %v854 = vpack.c.b16 %v809, %v808
        %v855 = vpack.c.b16 %v811, %v810
        %v856 = vpack.c.b16 %v813, %v812
        %v857 = vpack.c.b16 %v815, %v814
        %v858 = vpack.c.b16 %v817, %v816
        %v859 = vpack.c.b16 %v819, %v818
        %v860 = vpack.c.b16 %v821, %v820
        %v861 = vpack.c.b16 %v823, %v822
        %v862 = vpack.c.b16 %v825, %v824
        %v863 = vpack.c.b16 %v827, %v826
        %v864 = vpack.c.b16 %v829, %v828
        %v865 = vpack.c.b16 %v831, %v830
        %v866 = vpack.c.b16 %v833, %v832
        %v867 = vpack.c.b16 %v835, %v834
        %900 = vmatpush.bf16.msra.mxu0 %v843
        %901 = vmatpush.bf16.msra.mxu0 %v842
        %902 = vmatpush.bf16.msra.mxu0 %v841
        %903 = vmatpush.bf16.msra.mxu0 %v840
        %904 = vmatpush.bf16.msra.mxu0 %v839
        %905 = vmatpush.bf16.msra.mxu0 %v838
        %906 = vmatpush.bf16.msra.mxu0 %v837
        %907 = vmatpush.bf16.msra.mxu0 %v836
        %908 = vmatmul.bf16.gmra.mxu0 %v640
        %v909 = vpop.f32.mrf.mxu0
        %v910 = vadd.f32 0.0, %v909
        %v911 = vpop.f32.mrf.mxu0
        %v912 = vadd.f32 0.0, %v911
        %913 = vdwg.mxu0
        %914 = vmatpush.bf16.msra.mxu0 %v851
        %915 = vmatpush.bf16.msra.mxu0 %v850
        %916 = vmatpush.bf16.msra.mxu0 %v849
        %917 = vmatpush.bf16.msra.mxu0 %v848
        %918 = vmatpush.bf16.msra.mxu0 %v847
        %919 = vmatpush.bf16.msra.mxu0 %v846
        %920 = vmatpush.bf16.msra.mxu0 %v845
        %921 = vmatpush.bf16.msra.mxu0 %v844
        %922 = vmatmul.bf16.gmra.mxu0 %v641
        %v923 = vpop.f32.mrf.mxu0
        %v924 = vadd.f32 %v910, %v923
        %v925 = vpop.f32.mrf.mxu0
        %v926 = vadd.f32 %v912, %v925
        %927 = vdwg.mxu0
        %928 = vmatpush.bf16.msra.mxu0 %v859
        %929 = vmatpush.bf16.msra.mxu0 %v858
        %930 = vmatpush.bf16.msra.mxu0 %v857
        %931 = vmatpush.bf16.msra.mxu0 %v856
        %932 = vmatpush.bf16.msra.mxu0 %v855
        %933 = vmatpush.bf16.msra.mxu0 %v854
        %934 = vmatpush.bf16.msra.mxu0 %v853
        %935 = vmatpush.bf16.msra.mxu0 %v852
        %936 = vmatmul.bf16.gmra.mxu0 %v642
        %v937 = vpop.f32.mrf.mxu0
        %v938 = vadd.f32 %v924, %v937
        %v939 = vpop.f32.mrf.mxu0
        %v940 = vadd.f32 %v926, %v939
        %941 = vdwg.mxu0
        %942 = vmatpush.bf16.msra.mxu0 %v867
        %943 = vmatpush.bf16.msra.mxu0 %v866
        %944 = vmatpush.bf16.msra.mxu0 %v865
        %945 = vmatpush.bf16.msra.mxu0 %v864
        %946 = vmatpush.bf16.msra.mxu0 %v863
        %947 = vmatpush.bf16.msra.mxu0 %v862
        %948 = vmatpush.bf16.msra.mxu0 %v861
        %949 = vmatpush.bf16.msra.mxu0 %v860
        %950 = vmatmul.bf16.gmra.mxu0 %v643
        %v951 = vpop.f32.mrf.mxu0
        %v952 = vadd.f32 %v938, %v951
        %v953 = vpop.f32.mrf.mxu0
        %v954 = vadd.f32 %v940, %v953
        %955 = vdwg.mxu0
        %v956 = vadd.f32 %v638, %v952
        %v957 = vadd.f32 %v639, %v954
        %958 = vst [vmem:[#allocation2] sm:$0xff] %v956
        %959 = vst [vmem:[#allocation2 + $0x8] sm:$0xff] %v957
        %p960 = scmp.eq.s32.totalorder %s29, 7
        // Predicated region
        $region61: #{tpu_custom_call.1} parent=39 // pred_check
          %p961 = pneg %p960
        $region62: #{tpu_custom_call.1} parent=39 // pred_check_branch
          %963 = sbr.rel (%p961) target = $region64
        $region63: #{tpu_custom_call.1} parent=39 // pred_region
          %v964 = vld [vmem:[#allocation2] sm:$0xff]
          %v965 = vld [vmem:[#allocation2 + $0x8] sm:$0xff]
          %v966 = vld [vmem:[%s4] sm:$0x1]
          %v968 = vperm.slane %v966, 0
          %v970 = vadd.f32 %v964, %v968
          %v971 = vadd.f32 %v965, %v968
          %v972 = vtanh.pop %v970
          %v973 = vtanh.pop %v971
          %v974 = vmul.f32 %v972, %v972
          %v975 = vmul.f32 %v973, %v973
          %976 = vadd.xlane.f32.xlu0 %v974
          %v977 = vpop.xlane.xlu0 %976
          %978 = vadd.xlane.f32.xlu0 %v975
          %v979 = vpop.xlane.xlu0 %978
          %v980 = vmax.f32 %v977, 1e-24
          %v981 = vmax.f32 %v979, 1e-24
          %v982 = vrsqrt.pop %v980
          %v983 = vmul.f32 %v982, %v980
          %v984 = vmul.f32 %v983, %v982
          %v985 = vmul.f32 0.5, %v984
          %v986 = vsub.f32 1.5, %v985
          %v987 = vmul.f32 %v982, %v986
          %vm988 = vweird.f32 %v980
          %vm989 = vweird.f32 %v982
          %vm990 = vmor %vm988, %vm989
          %v991 = vsel %vm990, %v982, %v987
          %v992 = vrsqrt.pop %v981
          %v993 = vmul.f32 %v992, %v981
          %v994 = vmul.f32 %v993, %v992
          %v995 = vmul.f32 0.5, %v994
          %v996 = vsub.f32 1.5, %v995
          %v997 = vmul.f32 %v992, %v996
          %vm998 = vweird.f32 %v981
          %vm999 = vweird.f32 %v992
          %vm1000 = vmor %vm998, %vm999
          %v1001 = vsel %vm1000, %v992, %v997
          %v1002 = vmul.f32 %v972, %v991
          %v1003 = vmul.f32 %v973, %v1001
          %1004 = vst [vmem:[#allocation11] sm:$0xff] %v1002
          %1005 = vst [vmem:[#allocation11 + $0x8] sm:$0xff] %v1003
        $region64: #{tpu_custom_call.1} parent=39 // pred_fallthru
          _
        // Predicated region
        $region65: #{tpu_custom_call.1} parent=39 // pred_check
          %p1006 = pneg %p179
        $region66: #{tpu_custom_call.1} parent=39 // pred_check_branch
          %1008 = sbr.rel (%p1006) target = $region68
        $region67: #{tpu_custom_call.1} parent=39 // pred_region
          %s1009 = smul.u32 2, %s28
          %1011 = vsyncadd [#allocation5], 0
          %s1012 = smul.addr %s1009, 8
          %s1013 = scalar_lea.hbm %s5, %s1012
          %s1014 = sshll.u32 [#allocation11], 4
          %s1015 = int_to_ptr.vmem [resolvable:$true] %s1014
          %s1016 = sshll.u32 %s1013, 4
          %s1017 = int_to_ptr.hbm [resolvable:$true] %s1016
          %1022 = dma.vmem_to_hbm [thread:$0]  %s1015, 256, %s1017, [#allocation5], 128, 128, 8
        $region68: #{tpu_custom_call.1} parent=39 // pred_fallthru
          _
        // Predicated region
        $region69: #{tpu_custom_call.1} parent=39 // pred_check
          %p1023 = pneg %p179
        $region70: #{tpu_custom_call.1} parent=39 // pred_check_branch
          %1025 = sbr.rel (%p1023) target = $region72
        $region71: #{tpu_custom_call.1} parent=39 // pred_region
          %1027 = dma.done [#allocation5], 256
        $region72: #{tpu_custom_call.1} parent=39 // pred_fallthru
          _
      $region40: #{tpu_custom_call.1} parent=5 // pred_fallthru
        _
      %p1028 = scmp.le.s32.totalorder 2, %s19
      // Predicated region
      $region73: #{tpu_custom_call.1} parent=5 // pred_check
        %p1029 = pneg %p1028
      $region74: #{tpu_custom_call.1} parent=5 // pred_check_branch
        %1031 = sbr.rel (%p1029) target = $region76
      $region75: #{tpu_custom_call.1} parent=5 // pred_region
        %s1032 = ssub.s32 %s19, 2
      $region76: #{tpu_custom_call.1} parent=5 // pred_fallthru
        _
    $region6: #{tpu_custom_call.1} parent=1 // loop_footer
      %s23 = sadd.s32 1, %s19
    $region7: #{tpu_custom_call.1} parent=1 // loop_footer_branch
      %18 = sbr.rel target = $region3
    $region8: #{tpu_custom_call.1} parent=1 // loop_exit
      _
    %1033 = vsyncpa [#allocation4], 1
    %s1034 = scalar_lea.sflag [#allocation4], 1
    %1035 = vsyncpa %s1034, 1
    %1036 = vsyncpa [#allocation7], 1
    %s1037 = scalar_lea.sflag [#allocation7], 1
    %1038 = vsyncpa %s1037, 1
    %1039 = vsyncpa [#allocation10], 1
    %s1040 = scalar_lea.sflag [#allocation10], 1
    %1041 = vsyncpa %s1040, 1
    %1042 = vsyncpa [#allocation5], 1
    %s1043 = scalar_lea.sflag [#allocation5], 1
    %1044 = vsyncpa %s1043, 1

</llo_original>
